<compile_context>
chip_gen: v6e
topology: v6e:2x2x1
jax: 0.10.0
libtpu: 0.0.40
codegen_flags: <defaults>
</compile_context>

<pallas_src>
import functools

import jax
import jax.numpy as jnp
from jax.experimental import pallas as pl
from jax.experimental.pallas import tpu as pltpu


# ---------------------------------------------------------------------------
# Pallas kernels
# ---------------------------------------------------------------------------
def _noisy_linear_train_kernel(x_ref, wmu_ref, wsig_ref, eps_out_ref,
                               eps_in_ref, bias_ref, o_ref):
    # Rank-1 rebuild of weight_epsilon on the VPU (no (Out, In) epsilon DMA).
    eps = eps_out_ref[...] * eps_in_ref[...]                 # (tn,1)*(1,In)
    # Noisy weight built in f32 (weights may be stored bf16), then cast to the
    # MXU input dtype (== x dtype, prepared in the wrapper).
    w = (wmu_ref[...].astype(jnp.float32)
         + wsig_ref[...].astype(jnp.float32) * eps)          # (tn, In) f32
    w = w.astype(x_ref.dtype)

    bv = bias_ref[...]                                       # (3, tn) f32
    b = bv[0:1, :] + bv[1:2, :] * bv[2:3, :]                 # (1, tn)

    # Contract last dims of both operands -> (B, tn); no transposed copy.
    acc = jax.lax.dot_general(
        x_ref[...], w, dimension_numbers=(((1,), (1,)), ((), ())),
        preferred_element_type=jnp.float32)
    o_ref[...] = (acc + b).astype(o_ref.dtype)


def _noisy_linear_eval_kernel(x_ref, wmu_ref, bmu_ref, o_ref):
    acc = jax.lax.dot_general(
        x_ref[...], wmu_ref[...], dimension_numbers=(((1,), (1,)), ((), ())),
        preferred_element_type=jnp.float32)
    o_ref[...] = (acc + bmu_ref[...]).astype(o_ref.dtype)


# ---------------------------------------------------------------------------
# Helpers
# ---------------------------------------------------------------------------
def _round_up(x, m):
    return (x + m - 1) // m * m


# Eval shapes below this weight-element count go straight to XLA (pallas_call
# fixed overhead dominates tiny GEMVs).
_PALLAS_EVAL_MIN_ELEMS = 128 * 512

# Per-weight-block cap: 2 weight inputs x 2 buffers x 4 MiB = 16 MiB worst
# case -> fits v5e scoped default and leaves plenty of headroom on v7x.
_MAX_WEIGHT_BLOCK_BYTES = 4 << 20


def _pick_out_tile(out_pad, in_pad, weight_bytes):
    """Largest tn (multiple of 128 dividing out_pad) such that a weight block
    fits the VMEM budget and the grid has >= 2 steps when out_pad >= 256
    (so "parallel" can shard across v7x's 2 TensorCores)."""
    if out_pad <= 128:
        return out_pad
    best = 128
    t = 128
    while t <= out_pad:
        if out_pad % t == 0:
            fits = t * in_pad * weight_bytes <= _MAX_WEIGHT_BLOCK_BYTES
            keeps_two_blocks = (out_pad // t) >= 2
            if fits and keeps_two_blocks and t > best:
                best = t
        t += 128
    return best


# ---------------------------------------------------------------------------
# One-time layout / padding of the parameters (do NOT redo this per forward)
# ---------------------------------------------------------------------------
def prepare_noisy_linear(params, weight_dtype=jnp.float32):
    """Pad weights to lane-dense shapes once and (optionally) cast them to
    bf16; eps factors and biases stay f32."""
    out_dim, in_dim = params["weight_mu"].shape
    in_pad = _round_up(in_dim, 128)
    out_pad = _round_up(out_dim, 128)
    pad_w = ((0, out_pad - out_dim), (0, in_pad - in_dim))

    bias_stack = jnp.pad(
        jnp.stack([params["bias_mu"], params["bias_sigma"],
                   params["bias_epsilon"]]),
        ((0, 0), (0, out_pad - out_dim)))                      # (3, Out_pad) f32

    return dict(
        # raw (unpadded) references for the small-shape XLA eval fallback
        wmu_raw=params["weight_mu"],
        bmu_raw=params["bias_mu"],
        # padded, kernel-ready tensors
        wmu=jnp.pad(params["weight_mu"], pad_w).astype(weight_dtype),
        wsig=jnp.pad(params["weight_sigma"], pad_w).astype(weight_dtype),
        eps_out=jnp.pad(params["eps_out"],
                        (0, out_pad - out_dim)).reshape(out_pad, 1),
        eps_in=jnp.pad(params["eps_in"],
                       (0, in_pad - in_dim)).reshape(1, in_pad),
        bias_stack=bias_stack,
        bias_mu_row=jnp.pad(params["bias_mu"],
                            (0, out_pad - out_dim)).reshape(1, out_pad),
    )


# ---------------------------------------------------------------------------
# Forward
# ---------------------------------------------------------------------------
@functools.partial(jax.jit, static_argnames=("training",))
def noisy_linear_forward(x, prepared, training=True):
    """x: (B, In) float32.  prepared: dict from prepare_noisy_linear."""
    B, in_dim = x.shape
    out_dim = prepared["wmu_raw"].shape[0]
    out_pad, in_pad = prepared["wmu"].shape
    w_dtype = prepared["wmu"].dtype
    w_bytes = jnp.dtype(w_dtype).itemsize
    out_dtype = x.dtype

    # Small eval shapes: plain XLA GEMV + bias (pallas_call overhead dominates).
    if (not training) and (out_pad * in_pad < _PALLAS_EVAL_MIN_ELEMS):
        return x @ prepared["wmu_raw"].T + prepared["bmu_raw"]

    # Per-call x prep only: pad and cast to the (possibly bf16) weight dtype
    # here so the cast is not re-run once per output tile inside the kernel.
    B_pad = _round_up(B, 8)
    xp = jnp.pad(x, ((0, B_pad - B), (0, in_pad - in_dim))).astype(w_dtype)

    tn = _pick_out_tile(out_pad, in_pad, w_bytes)
    grid = (out_pad // tn,)

    x_spec = pl.BlockSpec((B_pad, in_pad), lambda j: (0, 0))
    w_spec = pl.BlockSpec((tn, in_pad), lambda j: (j, 0))
    out_spec = pl.BlockSpec((B_pad, tn), lambda j: (0, j))
    out_shape = jax.ShapeDtypeStruct((B_pad, out_pad), out_dtype)

    # Explicit VMEM budget: 2 weight inputs x 2 buffers + resident x + output
    # blocks + small eps/bias blocks.  Keep within a generation-safe window
    # (>= 32 MiB, <= 48 MiB: under v7x's 64 MiB physical, raises v5e's 16 MiB
    # scoped default when needed).
    vmem_est = (2 * 2 * tn * in_pad * w_bytes
                + 2 * B_pad * in_pad * w_bytes
                + 2 * B_pad * tn * 4
                + 2 * (tn * 4 + in_pad * 4 + 3 * tn * 4))
    vmem_limit = int(min(48 << 20, max(vmem_est + (8 << 20), 32 << 20)))
    cparams = pltpu.CompilerParams(dimension_semantics=("parallel",),
                                   vmem_limit_bytes=vmem_limit)

    flops = 2 * B_pad * in_pad * out_pad

    if training:
        bytes_accessed = (xp.size * w_bytes
                          + 2 * out_pad * in_pad * w_bytes          # wmu + wsig
                          + 4 * (out_pad + in_pad + 3 * out_pad)    # eps / bias
                          + 4 * B_pad * out_pad)                    # output
        out_p = pl.pallas_call(
            _noisy_linear_train_kernel,
            out_shape=out_shape,
            grid=grid,
            in_specs=[
                x_spec,
                w_spec,                                        # weight_mu block
                w_spec,                                        # weight_sigma block
                pl.BlockSpec((tn, 1), lambda j: (j, 0)),       # eps_out column
                pl.BlockSpec((1, in_pad), lambda j: (0, 0)),   # eps_in row
                pl.BlockSpec((3, tn), lambda j: (0, j)),       # fused bias stack
            ],
            out_specs=out_spec,
            compiler_params=cparams,
            cost_estimate=pl.CostEstimate(flops=flops, transcendentals=0,
                                          bytes_accessed=bytes_accessed),
        )(xp, prepared["wmu"], prepared["wsig"], prepared["eps_out"],
          prepared["eps_in"], prepared["bias_stack"])
    else:
        bytes_accessed = (xp.size * w_bytes + out_pad * in_pad * w_bytes
                          + 4 * out_pad + 4 * B_pad * out_pad)
        out_p = pl.pallas_call(
            _noisy_linear_eval_kernel,
            out_shape=out_shape,
            grid=grid,
            in_specs=[
                x_spec,
                w_spec,
                pl.BlockSpec((1, tn), lambda j: (0, j)),       # bias_mu row
            ],
            out_specs=out_spec,
            compiler_params=cparams,
            cost_estimate=pl.CostEstimate(flops=flops, transcendentals=0,
                                          bytes_accessed=bytes_accessed),
        )(xp, prepared["wmu"], prepared["bias_mu_row"])

    return out_p[:B, :out_dim]


# ---------------------------------------------------------------------------
# Deterministic parameter / noise initialization (mirrors the PyTorch module)
# ---------------------------------------------------------------------------
def _scale_noise(key, size):
    # noise.sign() * noise.abs().sqrt()
    n = jax.random.normal(key, (size,), dtype=jnp.float32)
    return jnp.sign(n) * jnp.sqrt(jnp.abs(n))


def init_noisy_linear(key, input_dim, output_dim, std_init=0.4):
    k_wmu, k_bmu, k_ein, k_eout, k_beps = jax.random.split(key, 5)
    mu_range = 1.0 / jnp.sqrt(jnp.float32(input_dim))

    weight_mu = jax.random.uniform(
        k_wmu, (output_dim, input_dim), jnp.float32, -mu_range, mu_range)
    bias_mu = jax.random.uniform(
        k_bmu, (output_dim,), jnp.float32, -mu_range, mu_range)
    weight_sigma = jnp.full((output_dim, input_dim),
                            std_init / jnp.sqrt(jnp.float32(input_dim)),
                            dtype=jnp.float32)
    bias_sigma = jnp.full((output_dim,),
                          std_init / jnp.sqrt(jnp.float32(output_dim)),
                          dtype=jnp.float32)

    eps_in = _scale_noise(k_ein, input_dim)
    eps_out = _scale_noise(k_eout, output_dim)
    weight_epsilon = jnp.outer(eps_out, eps_in)      # epsilon_out.ger(epsilon_in)
    bias_epsilon = _scale_noise(k_beps, output_dim)

    return dict(weight_mu=weight_mu, weight_sigma=weight_sigma,
                bias_mu=bias_mu, bias_sigma=bias_sigma,
                eps_in=eps_in, eps_out=eps_out,
                weight_epsilon=weight_epsilon, bias_epsilon=bias_epsilon)


# ---------------------------------------------------------------------------
# Pure-JAX reference (same semantics as the PyTorch forward)
# ---------------------------------------------------------------------------
def reference_forward(x, p, training=True):
    if training:
        w = p["weight_mu"] + p["weight_sigma"] * p["weight_epsilon"]
        b = p["bias_mu"] + p["bias_sigma"] * p["bias_epsilon"]
    else:
        w, b = p["weight_mu"], p["bias_mu"]
    return x @ w.T + b


if __name__ == "__main__":
    key = jax.random.PRNGKey(0)
    k_param, k_x, k_param2, k_x2 = jax.random.split(key, 4)

    # ---- Small shapes matching the original module usage ------------------
    batch, input_dim, output_dim = 2, 32, 16
    params = init_noisy_linear(k_param, input_dim, output_dim, std_init=0.4)
    prepared = prepare_noisy_linear(params)          # padded once, f32 weights
    x = jax.random.normal(k_x, (batch, input_dim), dtype=jnp.float32)

    y_train = noisy_linear_forward(x, prepared, training=True)   # Pallas
    y_eval = noisy_linear_forward(x, prepared, training=False)   # XLA fallback (tiny)
    jax.block_until_ready((y_train, y_eval))

    ref_train = reference_forward(x, params, training=True)
    ref_eval = reference_forward(x, params, training=False)
    assert y_train.shape == (batch, output_dim)
    assert y_eval.shape == (batch, output_dim)
    assert jnp.allclose(y_train, ref_train, atol=1e-5, rtol=1e-5)
    assert jnp.allclose(y_eval, ref_eval, atol=1e-5, rtol=1e-5)

    # ---- Larger shape: grid > 1 (megacore-shardable), Pallas eval path -----
    batch2, in2, out2 = 8, 256, 384
    params2 = init_noisy_linear(k_param2, in2, out2, std_init=0.4)
    prepared2 = prepare_noisy_linear(params2)
    x2 = jax.random.normal(k_x2, (batch2, in2), dtype=jnp.float32)

    y2_train = noisy_linear_forward(x2, prepared2, training=True)
    y2_eval = noisy_linear_forward(x2, prepared2, training=False)
    jax.block_until_ready((y2_train, y2_eval))
    assert jnp.allclose(y2_train, reference_forward(x2, params2, training=True),
                        atol=5e-4, rtol=5e-4)
    assert jnp.allclose(y2_eval, reference_forward(x2, params2, training=False),
                        atol=5e-4, rtol=5e-4)

    # ---- bf16 weight-storage path (half weight HBM traffic, bf16 MXU) ------
    prepared2_bf16 = prepare_noisy_linear(params2, weight_dtype=jnp.bfloat16)
    y2_bf16 = noisy_linear_forward(x2, prepared2_bf16, training=True)
    jax.block_until_ready(y2_bf16)
    assert jnp.allclose(y2_bf16, reference_forward(x2, params2, training=True),
                        atol=5e-2, rtol=5e-2)

    print("KERNEL_OK")
</pallas_src>

<mosaic_0001>
module attributes {stable_mosaic.version = 11 : i64} {
  func.func @_noisy_linear_train_kernel(%arg0: i32, %arg1: memref<8x128xf32, #tpu.memory_space<vmem>>, %arg2: memref<128x128xf32, #tpu.memory_space<vmem>>, %arg3: memref<128x128xf32, #tpu.memory_space<vmem>>, %arg4: memref<128x1xf32, #tpu.memory_space<vmem>>, %arg5: memref<1x128xf32, #tpu.memory_space<vmem>>, %arg6: memref<3x128xf32, #tpu.memory_space<vmem>>, %arg7: memref<8x128xf32, #tpu.memory_space<vmem>>) attributes {dimension_semantics = [#tpu.dimension_semantics<parallel>], iteration_bounds = array<i64: 1>, scalar_prefetch = 0 : i64, scratch_operands = 0 : i64, tpu.core_type = #tpu.core_type<tc>, window_params = [{pipeline_mode = #tpu.pipeline_mode<synchronous>, transform_indices = @transform_0, window_bounds = array<i64: 8, 128>}, {transform_indices = @transform_1, window_bounds = array<i64: 128, 128>}, {transform_indices = @transform_2, window_bounds = array<i64: 128, 128>}, {transform_indices = @transform_3, window_bounds = array<i64: 128, 1>}, {pipeline_mode = #tpu.pipeline_mode<synchronous>, transform_indices = @transform_4, window_bounds = array<i64: 1, 128>}, {transform_indices = @transform_5, window_bounds = array<i64: 3, 128>}, {transform_indices = @transform_6, window_bounds = array<i64: 8, 128>}]} {
    %c0 = arith.constant 0 : index
    %c0_0 = arith.constant 0 : index
    %0 = vector.load %arg4[%c0, %c0_0] : memref<128x1xf32, #tpu.memory_space<vmem>>, vector<128x1xf32>
    %c0_1 = arith.constant 0 : index
    %c0_2 = arith.constant 0 : index
    %1 = vector.load %arg5[%c0_1, %c0_2] : memref<1x128xf32, #tpu.memory_space<vmem>>, vector<1x128xf32>
    %2 = vector.broadcast %0 : vector<128x1xf32> to vector<128x128xf32>
    %3 = vector.broadcast %1 : vector<1x128xf32> to vector<128x128xf32>
    %4 = arith.mulf %2, %3 : vector<128x128xf32>
    %c0_3 = arith.constant 0 : index
    %c0_4 = arith.constant 0 : index
    %5 = vector.load %arg2[%c0_3, %c0_4] : memref<128x128xf32, #tpu.memory_space<vmem>>, vector<128x128xf32>
    %c0_5 = arith.constant 0 : index
    %c0_6 = arith.constant 0 : index
    %6 = vector.load %arg3[%c0_5, %c0_6] : memref<128x128xf32, #tpu.memory_space<vmem>>, vector<128x128xf32>
    %7 = arith.mulf %6, %4 : vector<128x128xf32>
    %8 = arith.addf %5, %7 : vector<128x128xf32>
    %c0_7 = arith.constant 0 : index
    %c0_8 = arith.constant 0 : index
    %9 = vector.load %arg6[%c0_7, %c0_8] : memref<3x128xf32, #tpu.memory_space<vmem>>, vector<3x128xf32>
    %10 = vector.extract_strided_slice %9 {offsets = [0, 0], sizes = [1, 128], strides = [1, 1]} : vector<3x128xf32> to vector<1x128xf32>
    %11 = vector.extract_strided_slice %9 {offsets = [1, 0], sizes = [1, 128], strides = [1, 1]} : vector<3x128xf32> to vector<1x128xf32>
    %12 = vector.extract_strided_slice %9 {offsets = [2, 0], sizes = [1, 128], strides = [1, 1]} : vector<3x128xf32> to vector<1x128xf32>
    %13 = arith.mulf %11, %12 : vector<1x128xf32>
    %14 = arith.addf %10, %13 : vector<1x128xf32>
    %c0_9 = arith.constant 0 : index
    %c0_10 = arith.constant 0 : index
    %15 = vector.load %arg1[%c0_9, %c0_10] : memref<8x128xf32, #tpu.memory_space<vmem>>, vector<8x128xf32>
    %cst = arith.constant dense<0.000000e+00> : vector<8x128xf32>
    %16 = tpu.matmul %15, %8, %cst {dimension_numbers = #tpu.dot_dimension_numbers<[1], [1], [0], [0], [0, 0, 1, 0], [], []>} : vector<8x128xf32>, vector<128x128xf32>, vector<8x128xf32> -> vector<8x128xf32>
    %17 = vector.broadcast %14 : vector<1x128xf32> to vector<8x128xf32>
    %18 = arith.addf %16, %17 : vector<8x128xf32>
    %c0_11 = arith.constant 0 : index
    %c0_12 = arith.constant 0 : index
    %19 = vector.load %arg7[%c0_11, %c0_12] : memref<8x128xf32, #tpu.memory_space<vmem>>, vector<8x128xf32>
    tpu.vector_store %arg7[%c0_11, %c0_12], %18 {strides = array<i32>} : memref<8x128xf32, #tpu.memory_space<vmem>>, vector<8x128xf32>,
    return
  }
  func.func @transform_0(%arg0: i32) -> (i32, i32) {
    %c0_i32 = arith.constant 0 : i32
    %c0_i32_0 = arith.constant 0 : i32
    %c0_i32_1 = arith.constant 0 : i32
    return %c0_i32, %c0_i32_0 : i32, i32
  }
  func.func @transform_1(%arg0: i32) -> (i32, i32) {
    %c0_i32 = arith.constant 0 : i32
    %c0_i32_0 = arith.constant 0 : i32
    return %arg0, %c0_i32 : i32, i32
  }
  func.func @transform_2(%arg0: i32) -> (i32, i32) {
    %c0_i32 = arith.constant 0 : i32
    %c0_i32_0 = arith.constant 0 : i32
    return %arg0, %c0_i32 : i32, i32
  }
  func.func @transform_3(%arg0: i32) -> (i32, i32) {
    %c0_i32 = arith.constant 0 : i32
    %c0_i32_0 = arith.constant 0 : i32
    return %arg0, %c0_i32 : i32, i32
  }
  func.func @transform_4(%arg0: i32) -> (i32, i32) {
    %c0_i32 = arith.constant 0 : i32
    %c0_i32_0 = arith.constant 0 : i32
    %c0_i32_1 = arith.constant 0 : i32
    return %c0_i32, %c0_i32_0 : i32, i32
  }
  func.func @transform_5(%arg0: i32) -> (i32, i32) {
    %c0_i32 = arith.constant 0 : i32
    %c0_i32_0 = arith.constant 0 : i32
    return %c0_i32, %arg0 : i32, i32
  }
  func.func @transform_6(%arg0: i32) -> (i32, i32) {
    %c0_i32 = arith.constant 0 : i32
    %c0_i32_0 = arith.constant 0 : i32
    return %c0_i32, %arg0 : i32, i32
  }
}

</mosaic_0001>

<llo_original>
// kernel: noisy_linear_forward.1
$region0: #{noisy_linear_forward.1}
  #allocation0 [shape = 'u32[]', space=smem, size = 0x4, offset = 0x4, fixed_abs, tag = 'smem constant byte address 0x4 - core index']
  #allocation1 [shape = 'u32[144,128]{1,0:T(1,128)}', space=vmem, size = 0x12000, scoped, tag = 'internal scratch']
  %s0 = inlined_call_operand.vmem [shape: f32[8,128], index: 0, kind: input, shape index: {}]
  %s1 = inlined_call_operand.vmem [shape: f32[128,128], index: 1, kind: input, shape index: {}]
  %s2 = inlined_call_operand.hbm [shape: f32[128,128], index: 2, kind: input, shape index: {}]
  %s3 = inlined_call_operand.vmem [shape: f32[128,1], index: 3, kind: input, shape index: {}]
  %s4 = inlined_call_operand.vmem [shape: f32[1,128], index: 4, kind: input, shape index: {}]
  %s5 = inlined_call_operand.vmem [shape: f32[3,128], index: 5, kind: input, shape index: {}]
  %s6 = inlined_call_operand.vmem [shape: f32[8,128], index: 6, kind: output, shape index: {}]
  %s7 = sld [smem:[#allocation0]]
  $region38: #{noisy_linear_forward.1} parent=0
    _
  %s9 = ssub.s32 1, %s7
  %s10 = scalar_select 0, %s9, %s7
  $region1: #{noisy_linear_forward.1} parent=0
    #allocation2 [shape = 'u8[65536]{0}', space=vmem, size = 0x10000, scoped, tag = 'input window, operand 2, single buffered']
    #allocation3 [shape = 's32[1]{0}', space=sflag, size = 0x4, scoped, tag = 'scoped memory for noisy_linear_forward.1']
    %11 = vsyncpa [#allocation3], 0
    // Predicated region
    $region2: #{noisy_linear_forward.1} parent=1 // pred_check
      _
    $region3: #{noisy_linear_forward.1} parent=1 // pred_check_branch
      %13 = sbr.rel (0) target = $region5
    $region4: #{noisy_linear_forward.1} parent=1 // pred_region
      _
    $region5: #{noisy_linear_forward.1} parent=1 // pred_fallthru
      _
    // Predicated region
    $region6: #{noisy_linear_forward.1} parent=1 // pred_check
      _
    $region7: #{noisy_linear_forward.1} parent=1 // pred_check_branch
      %15 = sbr.rel (0) target = $region9
    $region8: #{noisy_linear_forward.1} parent=1 // pred_region
      _
    $region9: #{noisy_linear_forward.1} parent=1 // pred_fallthru
      _
    // Predicated region
    $region10: #{noisy_linear_forward.1} parent=1 // pred_check
      _
    $region11: #{noisy_linear_forward.1} parent=1 // pred_check_branch
      %17 = sbr.rel (0) target = $region13
    $region12: #{noisy_linear_forward.1} parent=1 // pred_region
      %s19 = ssub.s32 2048, 2048
      %20 = vsyncadd [#allocation3], %s19
      %s21 = sshll.u32 [#allocation2], 4
      %s22 = int_to_ptr.vmem [resolvable:$true] %s21
      %27 = dma.hbm_to_vmem [thread:$0]  %s2, 2048, %s22, [#allocation3], 128, 128, 8
    $region13: #{noisy_linear_forward.1} parent=1 // pred_fallthru
      _
    // Predicated region
    $region14: #{noisy_linear_forward.1} parent=1 // pred_check
      _
    $region15: #{noisy_linear_forward.1} parent=1 // pred_check_branch
      %29 = sbr.rel (0) target = $region17
    $region16: #{noisy_linear_forward.1} parent=1 // pred_region
      _
    $region17: #{noisy_linear_forward.1} parent=1 // pred_fallthru
      _
    // Predicated region
    $region18: #{noisy_linear_forward.1} parent=1 // pred_check
      _
    $region19: #{noisy_linear_forward.1} parent=1 // pred_check_branch
      %31 = sbr.rel (0) target = $region21
    $region20: #{noisy_linear_forward.1} parent=1 // pred_region
      _
    $region21: #{noisy_linear_forward.1} parent=1 // pred_fallthru
      _
    // Predicated region
    $region22: #{noisy_linear_forward.1} parent=1 // pred_check
      _
    $region23: #{noisy_linear_forward.1} parent=1 // pred_check_branch
      %33 = sbr.rel (0) target = $region25
    $region24: #{noisy_linear_forward.1} parent=1 // pred_region
      _
    $region25: #{noisy_linear_forward.1} parent=1 // pred_fallthru
      _
    // Predicated region
    $region26: #{noisy_linear_forward.1} parent=1 // pred_check
      _
    $region27: #{noisy_linear_forward.1} parent=1 // pred_check_branch
      %35 = sbr.rel (0) target = $region29
    $region28: #{noisy_linear_forward.1} parent=1 // pred_region
      %36 = dma.done [#allocation3], 2048
    $region29: #{noisy_linear_forward.1} parent=1 // pred_fallthru
      _
    %v37 = vld [vmem:[%s3] sm:$0xff]
    %v38 = vld [vmem:[%s3 + $0x8] sm:$0xff]
    %v39 = vld [vmem:[%s3 + $0x10] sm:$0xff]
    %v40 = vld [vmem:[%s3 + $0x18] sm:$0xff]
    %v41 = vld [vmem:[%s3 + $0x20] sm:$0xff]
    %v42 = vld [vmem:[%s3 + $0x28] sm:$0xff]
    %v43 = vld [vmem:[%s3 + $0x30] sm:$0xff]
    %v44 = vld [vmem:[%s3 + $0x38] sm:$0xff]
    %v45 = vld [vmem:[%s3 + $0x40] sm:$0xff]
    %v46 = vld [vmem:[%s3 + $0x48] sm:$0xff]
    %v47 = vld [vmem:[%s3 + $0x50] sm:$0xff]
    %v48 = vld [vmem:[%s3 + $0x58] sm:$0xff]
    %v49 = vld [vmem:[%s3 + $0x60] sm:$0xff]
    %v50 = vld [vmem:[%s3 + $0x68] sm:$0xff]
    %v51 = vld [vmem:[%s3 + $0x70] sm:$0xff]
    %v52 = vld [vmem:[%s3 + $0x78] sm:$0xff]
    %v53 = vld [vmem:[%s4] sm:$0x1]
    %55 = vset.pattern.permute.xlu0 0
    %56 = vperm.xlu0 %55, %v37
    %v57 = vpop.permute.xlu0 %56
    %60 = vset.pattern.permute.xlu0 0
    %61 = vperm.xlu0 %60, %v38
    %v62 = vpop.permute.xlu0 %61
    %65 = vset.pattern.permute.xlu0 0
    %66 = vperm.xlu0 %65, %v39
    %v67 = vpop.permute.xlu0 %66
    %70 = vset.pattern.permute.xlu0 0
    %71 = vperm.xlu0 %70, %v40
    %v72 = vpop.permute.xlu0 %71
    %75 = vset.pattern.permute.xlu0 0
    %76 = vperm.xlu0 %75, %v41
    %v77 = vpop.permute.xlu0 %76
    %80 = vset.pattern.permute.xlu0 0
    %81 = vperm.xlu0 %80, %v42
    %v82 = vpop.permute.xlu0 %81
    %85 = vset.pattern.permute.xlu0 0
    %86 = vperm.xlu0 %85, %v43
    %v87 = vpop.permute.xlu0 %86
    %90 = vset.pattern.permute.xlu0 0
    %91 = vperm.xlu0 %90, %v44
    %v92 = vpop.permute.xlu0 %91
    %95 = vset.pattern.permute.xlu0 0
    %96 = vperm.xlu0 %95, %v45
    %v97 = vpop.permute.xlu0 %96
    %100 = vset.pattern.permute.xlu0 0
    %101 = vperm.xlu0 %100, %v46
    %v102 = vpop.permute.xlu0 %101
    %105 = vset.pattern.permute.xlu0 0
    %106 = vperm.xlu0 %105, %v47
    %v107 = vpop.permute.xlu0 %106
    %110 = vset.pattern.permute.xlu0 0
    %111 = vperm.xlu0 %110, %v48
    %v112 = vpop.permute.xlu0 %111
    %115 = vset.pattern.permute.xlu0 0
    %116 = vperm.xlu0 %115, %v49
    %v117 = vpop.permute.xlu0 %116
    %120 = vset.pattern.permute.xlu0 0
    %121 = vperm.xlu0 %120, %v50
    %v122 = vpop.permute.xlu0 %121
    %125 = vset.pattern.permute.xlu0 0
    %126 = vperm.xlu0 %125, %v51
    %v127 = vpop.permute.xlu0 %126
    %130 = vset.pattern.permute.xlu0 0
    %131 = vperm.xlu0 %130, %v52
    %v132 = vpop.permute.xlu0 %131
    %v135 = vlaneseq
    %v136 = vshrl.u32 %v135, 7
    %v137 = vsub.s32 0, %v136
    %v138 = vrot.slane %v53, %v137
    %v140 = vmul.f32 %v57, %v138
    %v141 = vmul.f32 %v62, %v138
    %v142 = vmul.f32 %v67, %v138
    %v143 = vmul.f32 %v72, %v138
    %v144 = vmul.f32 %v77, %v138
    %v145 = vmul.f32 %v82, %v138
    %v146 = vmul.f32 %v87, %v138
    %v147 = vmul.f32 %v92, %v138
    %v148 = vmul.f32 %v97, %v138
    %v149 = vmul.f32 %v102, %v138
    %v150 = vmul.f32 %v107, %v138
    %v151 = vmul.f32 %v112, %v138
    %v152 = vmul.f32 %v117, %v138
    %v153 = vmul.f32 %v122, %v138
    %v154 = vmul.f32 %v127, %v138
    %v155 = vmul.f32 %v132, %v138
    %v156 = vld [vmem:[%s1] sm:$0xff]
    %v157 = vld [vmem:[%s1 + $0x8] sm:$0xff]
    %v158 = vld [vmem:[%s1 + $0x10] sm:$0xff]
    %v159 = vld [vmem:[%s1 + $0x18] sm:$0xff]
    %v160 = vld [vmem:[%s1 + $0x20] sm:$0xff]
    %v161 = vld [vmem:[%s1 + $0x28] sm:$0xff]
    %v162 = vld [vmem:[%s1 + $0x30] sm:$0xff]
    %v163 = vld [vmem:[%s1 + $0x38] sm:$0xff]
    %v164 = vld [vmem:[%s1 + $0x40] sm:$0xff]
    %v165 = vld [vmem:[%s1 + $0x48] sm:$0xff]
    %v166 = vld [vmem:[%s1 + $0x50] sm:$0xff]
    %v167 = vld [vmem:[%s1 + $0x58] sm:$0xff]
    %v168 = vld [vmem:[%s1 + $0x60] sm:$0xff]
    %v169 = vld [vmem:[%s1 + $0x68] sm:$0xff]
    %v170 = vld [vmem:[%s1 + $0x70] sm:$0xff]
    %v171 = vld [vmem:[%s1 + $0x78] sm:$0xff]
    %v172 = vld [vmem:[#allocation2] sm:$0xff]
    %v173 = vld [vmem:[#allocation2 + $0x8] sm:$0xff]
    %v174 = vld [vmem:[#allocation2 + $0x10] sm:$0xff]
    %v175 = vld [vmem:[#allocation2 + $0x18] sm:$0xff]
    %v176 = vld [vmem:[#allocation2 + $0x20] sm:$0xff]
    %v177 = vld [vmem:[#allocation2 + $0x28] sm:$0xff]
    %v178 = vld [vmem:[#allocation2 + $0x30] sm:$0xff]
    %v179 = vld [vmem:[#allocation2 + $0x38] sm:$0xff]
    %v180 = vld [vmem:[#allocation2 + $0x40] sm:$0xff]
    %v181 = vld [vmem:[#allocation2 + $0x48] sm:$0xff]
    %v182 = vld [vmem:[#allocation2 + $0x50] sm:$0xff]
    %v183 = vld [vmem:[#allocation2 + $0x58] sm:$0xff]
    %v184 = vld [vmem:[#allocation2 + $0x60] sm:$0xff]
    %v185 = vld [vmem:[#allocation2 + $0x68] sm:$0xff]
    %v186 = vld [vmem:[#allocation2 + $0x70] sm:$0xff]
    %v187 = vld [vmem:[#allocation2 + $0x78] sm:$0xff]
    %v188 = vmul.f32 %v172, %v140
    %v189 = vmul.f32 %v173, %v141
    %v190 = vmul.f32 %v174, %v142
    %v191 = vmul.f32 %v175, %v143
    %v192 = vmul.f32 %v176, %v144
    %v193 = vmul.f32 %v177, %v145
    %v194 = vmul.f32 %v178, %v146
    %v195 = vmul.f32 %v179, %v147
    %v196 = vmul.f32 %v180, %v148
    %v197 = vmul.f32 %v181, %v149
    %v198 = vmul.f32 %v182, %v150
    %v199 = vmul.f32 %v183, %v151
    %v200 = vmul.f32 %v184, %v152
    %v201 = vmul.f32 %v185, %v153
    %v202 = vmul.f32 %v186, %v154
    %v203 = vmul.f32 %v187, %v155
    %v204 = vadd.f32 %v156, %v188
    %v205 = vadd.f32 %v157, %v189
    %v206 = vadd.f32 %v158, %v190
    %v207 = vadd.f32 %v159, %v191
    %v208 = vadd.f32 %v160, %v192
    %v209 = vadd.f32 %v161, %v193
    %v210 = vadd.f32 %v162, %v194
    %v211 = vadd.f32 %v163, %v195
    %v212 = vadd.f32 %v164, %v196
    %v213 = vadd.f32 %v165, %v197
    %v214 = vadd.f32 %v166, %v198
    %v215 = vadd.f32 %v167, %v199
    %v216 = vadd.f32 %v168, %v200
    %v217 = vadd.f32 %v169, %v201
    %v218 = vadd.f32 %v170, %v202
    %v219 = vadd.f32 %v171, %v203
    %v220 = vld [vmem:[%s5] sm:$0x7]
    %v222 = vrot.slane %v220, 1
    %v224 = vmul.f32 %v220, %v222
    %v226 = vrot.slane %v224, 1
    %v228 = vadd.f32 %v220, %v226
    %v229 = vld [vmem:[%s0] sm:$0xff]
    %v230 = vlaneseq
    %v231 = vshrl.u32 %v230, 7
    %v232 = vsub.s32 0, %v231
    %v233 = vrot.slane %v228, %v232
    %234 = vmatprep.subr.mxu0 0.0
    %235 = vmatpush1.xpose.msra.mxu0 %v219
    %236 = vmatprep.subr.mxu0 0.0
    %237 = vmatpush1.xpose.msra.mxu0 %v218
    %238 = vmatprep.subr.mxu0 0.0
    %239 = vmatpush1.xpose.msra.mxu0 %v217
    %240 = vmatprep.subr.mxu0 0.0
    %241 = vmatpush1.xpose.msra.mxu0 %v216
    %242 = vmatprep.subr.mxu0 0.0
    %243 = vmatpush1.xpose.msra.mxu0 %v215
    %244 = vmatprep.subr.mxu0 0.0
    %245 = vmatpush1.xpose.msra.mxu0 %v214
    %246 = vmatprep.subr.mxu0 0.0
    %247 = vmatpush1.xpose.msra.mxu0 %v213
    %248 = vmatprep.subr.mxu0 0.0
    %249 = vmatpush1.xpose.msra.mxu0 %v212
    %250 = vmatprep.subr.mxu0 0.0
    %251 = vmatpush1.xpose.msra.mxu0 %v211
    %252 = vmatprep.subr.mxu0 0.0
    %253 = vmatpush1.xpose.msra.mxu0 %v210
    %254 = vmatprep.subr.mxu0 0.0
    %255 = vmatpush1.xpose.msra.mxu0 %v209
    %256 = vmatprep.subr.mxu0 0.0
    %257 = vmatpush1.xpose.msra.mxu0 %v208
    %258 = vmatprep.subr.mxu0 0.0
    %259 = vmatpush1.xpose.msra.mxu0 %v207
    %260 = vmatprep.subr.mxu0 0.0
    %261 = vmatpush1.xpose.msra.mxu0 %v206
    %262 = vmatprep.subr.mxu0 0.0
    %263 = vmatpush1.xpose.msra.mxu0 %v205
    %264 = vmatprep.subr.mxu0 0.0
    %265 = vmatpush1.xpose.msra.mxu0 %v204
    %266 = vmatprep.subr.mxu0 0.0
    %267 = vmatpush2.xpose.msra.mxu0 0.0
    %268 = vmatprep.subr.mxu0 0.0
    %269 = vmatpush2.xpose.msra.mxu0 0.0
    %270 = vmatprep.subr.mxu0 0.0
    %271 = vmatpush2.xpose.msra.mxu0 0.0
    %272 = vmatprep.subr.mxu0 0.0
    %273 = vmatpush2.xpose.msra.mxu0 0.0
    %274 = vmatprep.subr.mxu0 0.0
    %275 = vmatpush2.xpose.msra.mxu0 0.0
    %276 = vmatprep.subr.mxu0 0.0
    %277 = vmatpush2.xpose.msra.mxu0 0.0
    %278 = vmatprep.subr.mxu0 0.0
    %279 = vmatpush2.xpose.msra.mxu0 0.0
    %280 = vmatprep.subr.mxu0 0.0
    %281 = vmatpush2.xpose.msra.mxu0 0.0
    %282 = vmatprep.subr.mxu0 0.0
    %283 = vmatpush2.xpose.msra.mxu0 0.0
    %284 = vmatprep.subr.mxu0 0.0
    %285 = vmatpush2.xpose.msra.mxu0 0.0
    %286 = vmatprep.subr.mxu0 0.0
    %287 = vmatpush2.xpose.msra.mxu0 0.0
    %288 = vmatprep.subr.mxu0 0.0
    %289 = vmatpush2.xpose.msra.mxu0 0.0
    %290 = vmatprep.subr.mxu0 0.0
    %291 = vmatpush2.xpose.msra.mxu0 0.0
    %292 = vmatprep.subr.mxu0 0.0
    %293 = vmatpush2.xpose.msra.mxu0 0.0
    %294 = vmatprep.subr.mxu0 0.0
    %295 = vmatpush2.xpose.msra.mxu0 0.0
    %296 = vmatprep.subr.mxu0 0.0
    %297 = vmatpush2.xpose.msra.mxu0 0.0
    %298 = vmatprep.mubr.f32.mxu0 0.0
    %299 = vmatmul.mubr.f32.gmra.mxu0 %v229
    %v300 = vpop.f32.mrf.mxu0
    %v301 = vadd.f32 %v233, %v300
    %v302 = vpop.f32.mrf.mxu0
    %303 = vdwg.mxu0
    %304 = vst [vmem:[%s6] sm:$0xff] %v301
    // Predicated region
    $region30: #{noisy_linear_forward.1} parent=1 // pred_check
      _
    $region31: #{noisy_linear_forward.1} parent=1 // pred_check_branch
      %306 = sbr.rel (0) target = $region33
    $region32: #{noisy_linear_forward.1} parent=1 // pred_region
      _
    $region33: #{noisy_linear_forward.1} parent=1 // pred_fallthru
      _
    // Predicated region
    $region34: #{noisy_linear_forward.1} parent=1 // pred_check
      _
    $region35: #{noisy_linear_forward.1} parent=1 // pred_check_branch
      %308 = sbr.rel (0) target = $region37
    $region36: #{noisy_linear_forward.1} parent=1 // pred_region
      _
    $region37: #{noisy_linear_forward.1} parent=1 // pred_fallthru
      _
    %309 = vsyncpa [#allocation3], 1

</llo_original>
